<compile_context>
chip_gen: v7x
topology: tpu7x:2x2x1
jax: 0.10.0
libtpu: 0.0.40
codegen_flags: <defaults>
</compile_context>

<pallas_src>
import jax
import jax.numpy as jnp
from jax import lax
from jax.experimental import pallas as pl
from jax.experimental.pallas import tpu as pltpu

EPS = 1e-5


def head_kernel(xcol_ref, w1_ref, b1_ref, w2_ref, b2_ref, out_ref):
    # xcol_ref: (1, 9*Cin, HW)   im2col'd input, one batch element (lane = HW)
    # w1_ref:   (C1, 9*Cin)      3x3 conv weight, BN scale folded in
    # b1_ref:   (C1, 1)          conv1 bias + folded BN shift
    # w2_ref:   (Cout, C1)       1x1 conv weight
    # b2_ref:   (Cout, 1)        1x1 conv bias
    # out_ref:  (1, Cout, HW)
    x = xcol_ref[0]                                            # (9*Cin, HW)

    # conv1 + (folded) BN: single K=9*Cin matmul with HW on the lane axis.
    h = jnp.dot(w1_ref[...], x, preferred_element_type=jnp.float32)
    h = jnp.maximum(h + b1_ref[...], 0.0)                      # ReLU

    # 1x1 conv == per-pixel matmul.
    y = jnp.dot(w2_ref[...], h, preferred_element_type=jnp.float32)
    out_ref[0] = (y + b2_ref[...]).astype(out_ref.dtype)


@jax.jit
def classification_head(x_nchw, w1_oihw, b1, gamma, beta, r_mean, r_var,
                        w2_oihw, b2):
    """Pallas forward pass matching ClassificationHead.forward (eval-mode BN).

    x_nchw:  (N, Cin, H, W)         PyTorch NCHW input
    w1_oihw: (C1, Cin, 3, 3), b1: (C1,)
    gamma/beta/r_mean/r_var: (C1,)  BatchNorm2d parameters / running stats
    w2_oihw: (Cout, C1, 1, 1), b2: (Cout,)
    returns: (N, Cout, H, W)        PyTorch NCHW output
    """
    x = x_nchw.astype(jnp.float32)
    N, Cin, H, W = x.shape
    C1 = w1_oihw.shape[0]
    Cout = w2_oihw.shape[0]
    HW = H * W
    K = 9 * Cin

    # --- im2col directly from NCHW (no NHWC transpose, single pad) ---------
    xp = jnp.pad(x, ((0, 0), (0, 0), (1, 1), (1, 1)))
    taps = [xp[:, :, dh:dh + H, dw:dw + W]          # each (N, Cin, H, W)
            for dh in range(3) for dw in range(3)]
    xcol = jnp.stack(taps, axis=1).reshape(N, K, HW)            # (N, 9*Cin, HW)

    # --- fold BatchNorm (eval) into conv1 weight/bias -----------------------
    scale = gamma.astype(jnp.float32) * lax.rsqrt(r_var.astype(jnp.float32) + EPS)
    # weight layout (O, KH, KW, C) flattened to (O, 9*Cin): matches tap order
    w1_mat = jnp.transpose(w1_oihw.astype(jnp.float32), (0, 2, 3, 1)).reshape(C1, K)
    w1f = w1_mat * scale[:, None]                               # (C1, 9*Cin)
    b1f = (scale * (b1.astype(jnp.float32) - r_mean.astype(jnp.float32))
           + beta.astype(jnp.float32))[:, None]                 # (C1, 1)

    w2m = w2_oihw[:, :, 0, 0].astype(jnp.float32)               # (Cout, C1)
    b2m = b2.astype(jnp.float32)[:, None]                       # (Cout, 1)

    out_flat = pl.pallas_call(
        head_kernel,
        out_shape=jax.ShapeDtypeStruct((N, Cout, HW), jnp.float32),
        grid_spec=pltpu.PrefetchScalarGridSpec(
            num_scalar_prefetch=0,
            grid=(N,),
            in_specs=[
                pl.BlockSpec((1, K, HW), lambda n: (n, 0, 0)),
                pl.BlockSpec((C1, K), lambda n: (0, 0)),
                pl.BlockSpec((C1, 1), lambda n: (0, 0)),
                pl.BlockSpec((Cout, C1), lambda n: (0, 0)),
                pl.BlockSpec((Cout, 1), lambda n: (0, 0)),
            ],
            out_specs=pl.BlockSpec((1, Cout, HW), lambda n: (n, 0, 0)),
        ),
        compiler_params=pltpu.CompilerParams(
            dimension_semantics=("parallel",)),
    )(xcol, w1f, b1f, w2m, b2m)

    # Lane-dense (N, Cout, H*W) -> NCHW is a free reshape (no transpose).
    return out_flat.reshape(N, Cout, H, W)


def reference(x_nchw, w1_oihw, b1, gamma, beta, r_mean, r_var, w2_oihw, b2):
    """Pure-JAX reference of the PyTorch module forward (eval-mode BN)."""
    x = x_nchw.astype(jnp.float32)
    y = lax.conv_general_dilated(
        x, w1_oihw.astype(jnp.float32), (1, 1), "SAME",
        dimension_numbers=("NCHW", "OIHW", "NCHW"))
    y = y + b1[None, :, None, None]
    s = gamma * lax.rsqrt(r_var + EPS)
    y = (y - r_mean[None, :, None, None]) * s[None, :, None, None] \
        + beta[None, :, None, None]
    y = jnp.maximum(y, 0.0)
    out = lax.conv_general_dilated(
        y, w2_oihw.astype(jnp.float32), (1, 1), "VALID",
        dimension_numbers=("NCHW", "OIHW", "NCHW"))
    return out + b2[None, :, None, None]


if __name__ == "__main__":
    # channel=32 (no map/vis), category_num=2, anchor_num_per_loc=6 -> Cout=12
    N, Cin, H, W = 2, 32, 16, 16
    C1 = Cin
    category_num, anchor_num_per_loc = 2, 6
    Cout = category_num * anchor_num_per_loc

    key = jax.random.PRNGKey(0)
    kx, kw1, kb1, kg, kbe, km, kv, kw2, kb2 = jax.random.split(key, 9)

    x = jax.random.normal(kx, (N, Cin, H, W), dtype=jnp.float32)

    # Conv2d(32, 32, 3) params (PyTorch OIHW layout)
    w1 = jax.random.normal(kw1, (C1, Cin, 3, 3), dtype=jnp.float32) * 0.05
    b1 = jax.random.normal(kb1, (C1,), dtype=jnp.float32) * 0.05

    # BatchNorm2d(32) eval-mode params + running statistics
    gamma = 1.0 + 0.1 * jax.random.normal(kg, (C1,), dtype=jnp.float32)
    beta = 0.1 * jax.random.normal(kbe, (C1,), dtype=jnp.float32)
    r_mean = 0.1 * jax.random.normal(km, (C1,), dtype=jnp.float32)
    r_var = jax.random.uniform(kv, (C1,), dtype=jnp.float32,
                               minval=0.5, maxval=1.5)

    # Conv2d(32, Cout, 1) params
    w2 = jax.random.normal(kw2, (Cout, C1, 1, 1), dtype=jnp.float32) * 0.05
    b2 = jax.random.normal(kb2, (Cout,), dtype=jnp.float32) * 0.05

    out = classification_head(x, w1, b1, gamma, beta, r_mean, r_var, w2, b2)
    out = jax.block_until_ready(out)

    ref = reference(x, w1, b1, gamma, beta, r_mean, r_var, w2, b2)
    assert out.shape == (N, Cout, H, W), out.shape
    max_err = float(jnp.max(jnp.abs(out - ref)))
    assert jnp.allclose(out, ref, rtol=1e-4, atol=5e-4), max_err

    print("KERNEL_OK")
</pallas_src>

<mosaic_0001>
module attributes {stable_mosaic.version = 11 : i64} {
  func.func @head_kernel(%arg0: i32, %arg1: memref<1x288x256xf32, #tpu.memory_space<vmem>>, %arg2: memref<32x288xf32, #tpu.memory_space<vmem>>, %arg3: memref<32x1xf32, #tpu.memory_space<vmem>>, %arg4: memref<12x32xf32, #tpu.memory_space<vmem>>, %arg5: memref<12x1xf32, #tpu.memory_space<vmem>>, %arg6: memref<1x12x256xf32, #tpu.memory_space<vmem>>) attributes {dimension_semantics = [#tpu.dimension_semantics<parallel>], iteration_bounds = array<i64: 2>, scalar_prefetch = 0 : i64, scratch_operands = 0 : i64, tpu.core_type = #tpu.core_type<tc>, window_params = [{transform_indices = @transform_0, window_bounds = array<i64: 1, 288, 256>}, {pipeline_mode = #tpu.pipeline_mode<synchronous>, transform_indices = @transform_1, window_bounds = array<i64: 32, 288>}, {pipeline_mode = #tpu.pipeline_mode<synchronous>, transform_indices = @transform_2, window_bounds = array<i64: 32, 1>}, {pipeline_mode = #tpu.pipeline_mode<synchronous>, transform_indices = @transform_3, window_bounds = array<i64: 12, 32>}, {pipeline_mode = #tpu.pipeline_mode<synchronous>, transform_indices = @transform_4, window_bounds = array<i64: 12, 1>}, {transform_indices = @transform_5, window_bounds = array<i64: 1, 12, 256>}]} {
    %c0 = arith.constant 0 : index
    %c0_0 = arith.constant 0 : index
    %c0_1 = arith.constant 0 : index
    %0 = vector.load %arg1[%c0, %c0_0, %c0_1] : memref<1x288x256xf32, #tpu.memory_space<vmem>>, vector<1x288x256xf32>
    %1 = vector.shape_cast %0 : vector<1x288x256xf32> to vector<288x256xf32>
    %c0_2 = arith.constant 0 : index
    %c0_3 = arith.constant 0 : index
    %2 = vector.load %arg2[%c0_2, %c0_3] : memref<32x288xf32, #tpu.memory_space<vmem>>, vector<32x288xf32>
    %cst = arith.constant dense<0.000000e+00> : vector<32x256xf32>
    %3 = tpu.matmul %2, %1, %cst {dimension_numbers = #tpu.dot_dimension_numbers<[1], [0], [0], [1], [0, 0, 1, 1], [], []>} : vector<32x288xf32>, vector<288x256xf32>, vector<32x256xf32> -> vector<32x256xf32>
    %c0_4 = arith.constant 0 : index
    %c0_5 = arith.constant 0 : index
    %4 = vector.load %arg3[%c0_4, %c0_5] : memref<32x1xf32, #tpu.memory_space<vmem>>, vector<32x1xf32>
    %5 = vector.broadcast %4 : vector<32x1xf32> to vector<32x256xf32>
    %6 = arith.addf %3, %5 : vector<32x256xf32>
    %cst_6 = arith.constant 0.000000e+00 : f32
    %7 = vector.broadcast %cst_6 : f32 to vector<32x256xf32>
    %8 = arith.maximumf %6, %7 : vector<32x256xf32>
    %c0_7 = arith.constant 0 : index
    %c0_8 = arith.constant 0 : index
    %9 = vector.load %arg4[%c0_7, %c0_8] : memref<12x32xf32, #tpu.memory_space<vmem>>, vector<12x32xf32>
    %cst_9 = arith.constant dense<0.000000e+00> : vector<12x256xf32>
    %10 = tpu.matmul %9, %8, %cst_9 {dimension_numbers = #tpu.dot_dimension_numbers<[1], [0], [0], [1], [0, 0, 1, 1], [], []>} : vector<12x32xf32>, vector<32x256xf32>, vector<12x256xf32> -> vector<12x256xf32>
    %c0_10 = arith.constant 0 : index
    %c0_11 = arith.constant 0 : index
    %11 = vector.load %arg5[%c0_10, %c0_11] : memref<12x1xf32, #tpu.memory_space<vmem>>, vector<12x1xf32>
    %12 = vector.broadcast %11 : vector<12x1xf32> to vector<12x256xf32>
    %13 = arith.addf %10, %12 : vector<12x256xf32>
    %c0_12 = arith.constant 0 : index
    %c0_13 = arith.constant 0 : index
    %c0_14 = arith.constant 0 : index
    %14 = vector.load %arg6[%c0_12, %c0_13, %c0_14] : memref<1x12x256xf32, #tpu.memory_space<vmem>>, vector<1x12x256xf32>
    %15 = vector.shape_cast %14 : vector<1x12x256xf32> to vector<12x256xf32>
    %16 = vector.shape_cast %13 : vector<12x256xf32> to vector<1x12x256xf32>
    tpu.vector_store %arg6[%c0_12, %c0_13, %c0_14], %16 {strides = array<i32>} : memref<1x12x256xf32, #tpu.memory_space<vmem>>, vector<1x12x256xf32>,
    return
  }
  func.func @transform_0(%arg0: i32) -> (i32, i32, i32) {
    %c0_i32 = arith.constant 0 : i32
    %c0_i32_0 = arith.constant 0 : i32
    %c0_i32_1 = arith.constant 0 : i32
    return %arg0, %c0_i32, %c0_i32_0 : i32, i32, i32
  }
  func.func @transform_1(%arg0: i32) -> (i32, i32) {
    %c0_i32 = arith.constant 0 : i32
    %c0_i32_0 = arith.constant 0 : i32
    %c0_i32_1 = arith.constant 0 : i32
    return %c0_i32, %c0_i32_0 : i32, i32
  }
  func.func @transform_2(%arg0: i32) -> (i32, i32) {
    %c0_i32 = arith.constant 0 : i32
    %c0_i32_0 = arith.constant 0 : i32
    %c0_i32_1 = arith.constant 0 : i32
    return %c0_i32, %c0_i32_0 : i32, i32
  }
  func.func @transform_3(%arg0: i32) -> (i32, i32) {
    %c0_i32 = arith.constant 0 : i32
    %c0_i32_0 = arith.constant 0 : i32
    %c0_i32_1 = arith.constant 0 : i32
    return %c0_i32, %c0_i32_0 : i32, i32
  }
  func.func @transform_4(%arg0: i32) -> (i32, i32) {
    %c0_i32 = arith.constant 0 : i32
    %c0_i32_0 = arith.constant 0 : i32
    %c0_i32_1 = arith.constant 0 : i32
    return %c0_i32, %c0_i32_0 : i32, i32
  }
  func.func @transform_5(%arg0: i32) -> (i32, i32, i32) {
    %c0_i32 = arith.constant 0 : i32
    %c0_i32_0 = arith.constant 0 : i32
    %c0_i32_1 = arith.constant 0 : i32
    return %arg0, %c0_i32, %c0_i32_0 : i32, i32, i32
  }
}

</mosaic_0001>

<llo_original>
// kernel: classification_head.1
$region0: #{classification_head.1}
  #allocation0 [shape = 'u32[]', space=smem, size = 0x4, offset = 0x4, fixed_abs, tag = 'smem constant byte address 0x4 - core index']
  #allocation1 [shape = 'u32[144,128]{1,0:T(1,128)}', space=vmem, size = 0x12000, scoped, tag = 'internal scratch']
  %s0 = inlined_call_operand.vmem [shape: f32[2,288,256], index: 0, kind: input, shape index: {}]
  %s1 = inlined_call_operand.vmem [shape: f32[32,288], index: 1, kind: input, shape index: {}]
  %s2 = inlined_call_operand.vmem [shape: f32[32,1], index: 2, kind: input, shape index: {}]
  %s3 = inlined_call_operand.vmem [shape: f32[12,32], index: 3, kind: input, shape index: {}]
  %s4 = inlined_call_operand.vmem [shape: f32[12,1], index: 4, kind: input, shape index: {}]
  %s5 = inlined_call_operand.vmem [shape: f32[2,12,256], index: 5, kind: output, shape index: {}]
  %s6 = sld [smem:[#allocation0]]
  $region53: #{classification_head.1} parent=0
    _
  %s8 = ssub.s32 1, %s6
  %s9 = scalar_select 0, %s8, %s6
  loop: start=0, step=1, limit=4
  $region2: #{classification_head.1} parent=0 // loop_pre_header
    _
  $region3: #{classification_head.1} parent=0 // loop_header
    %s11 = sphi 0, %s15
    %p12 = scmp.ge.s32.totalorder %s11, 4
    %s21 = sphi 0, %s23
    %s24 = sphi 0, %s21
    %s25 = sphi 0, %s24
    %s41 = sphi 0, %s25
    %s45 = sphi 0, %s45
    %s47 = sphi 0, %s45
    %s48 = sphi 0, %s47
    %s62 = sphi 0, %s48
    %s66 = sphi 0, %s66
    %s68 = sphi 0, %s66
    %s69 = sphi 0, %s68
    %s83 = sphi 0, %s69
    %s87 = sphi 0, %s87
    %s89 = sphi 0, %s87
    %s90 = sphi 0, %s89
    %s104 = sphi 0, %s90
    %s108 = sphi 0, %s108
    %s110 = sphi 0, %s108
    %s111 = sphi 0, %s110
    %s125 = sphi 0, %s111
    %s131 = sphi 0, %s133
    %s134 = sphi 0, %s131
    %s135 = sphi 0, %s134
    %s151 = sphi 0, %s135
  $region4: #{classification_head.1} parent=0 // loop_header_branch
    %14 = sbr.rel (%p12) target = $region8
  $region5: #{classification_head.1} parent=0 // loop_body
    %s16 = ssub.s32 %s11, 1
    %s17 = ssub.s32 %s11, 2
    %s18 = sadd.s32 %s11, 1
    %s19 = ssub.s32 %s11, %s18
    %p20 = scmp.eq.s32.totalorder %s19, 0
    %s22 = sadd.s32 %s21, 1
    %s23 = scalar_select %p20, %s21, %s22
    %p26 = pneg %p20
    %p27 = scmp.eq.s32.totalorder %s11, 1
    %p28 = por %p26, %p27
    %p29 = scmp.ne.s32.totalorder %s21, %s24
    %p30 = scmp.eq.s32.totalorder %s11, 0
    %p31 = por %p29, %p30
    %p32 = scmp.ne.s32.totalorder %s21, %s24
    %p33 = scmp.eq.s32.totalorder %s16, 1
    %p34 = por %p32, %p33
    %p35 = scmp.ne.s32.totalorder %s24, %s25
    %p36 = scmp.eq.s32.totalorder %s16, 0
    %p37 = por %p35, %p36
    %p38 = scmp.ne.s32.totalorder %s24, %s25
    %p39 = scmp.eq.s32.totalorder %s17, 1
    %p40 = por %p38, %p39
    %p42 = scmp.ne.s32.totalorder %s25, %s41
    %p43 = scmp.eq.s32.totalorder %s17, 0
    %p44 = por %p42, %p43
    %s46 = sadd.s32 %s45, 1
    %p49 = scmp.eq.s32.totalorder %s11, 1
    %p50 = scmp.ne.s32.totalorder %s45, %s47
    %p51 = scmp.eq.s32.totalorder %s11, 0
    %p52 = por %p50, %p51
    %p53 = scmp.ne.s32.totalorder %s45, %s47
    %p54 = scmp.eq.s32.totalorder %s16, 1
    %p55 = por %p53, %p54
    %p56 = scmp.ne.s32.totalorder %s47, %s48
    %p57 = scmp.eq.s32.totalorder %s16, 0
    %p58 = por %p56, %p57
    %p59 = scmp.ne.s32.totalorder %s47, %s48
    %p60 = scmp.eq.s32.totalorder %s17, 1
    %p61 = por %p59, %p60
    %p63 = scmp.ne.s32.totalorder %s48, %s62
    %p64 = scmp.eq.s32.totalorder %s17, 0
    %p65 = por %p63, %p64
    %s67 = sadd.s32 %s66, 1
    %p70 = scmp.eq.s32.totalorder %s11, 1
    %p71 = scmp.ne.s32.totalorder %s66, %s68
    %p72 = scmp.eq.s32.totalorder %s11, 0
    %p73 = por %p71, %p72
    %p74 = scmp.ne.s32.totalorder %s66, %s68
    %p75 = scmp.eq.s32.totalorder %s16, 1
    %p76 = por %p74, %p75
    %p77 = scmp.ne.s32.totalorder %s68, %s69
    %p78 = scmp.eq.s32.totalorder %s16, 0
    %p79 = por %p77, %p78
    %p80 = scmp.ne.s32.totalorder %s68, %s69
    %p81 = scmp.eq.s32.totalorder %s17, 1
    %p82 = por %p80, %p81
    %p84 = scmp.ne.s32.totalorder %s69, %s83
    %p85 = scmp.eq.s32.totalorder %s17, 0
    %p86 = por %p84, %p85
    %s88 = sadd.s32 %s87, 1
    %p91 = scmp.eq.s32.totalorder %s11, 1
    %p92 = scmp.ne.s32.totalorder %s87, %s89
    %p93 = scmp.eq.s32.totalorder %s11, 0
    %p94 = por %p92, %p93
    %p95 = scmp.ne.s32.totalorder %s87, %s89
    %p96 = scmp.eq.s32.totalorder %s16, 1
    %p97 = por %p95, %p96
    %p98 = scmp.ne.s32.totalorder %s89, %s90
    %p99 = scmp.eq.s32.totalorder %s16, 0
    %p100 = por %p98, %p99
    %p101 = scmp.ne.s32.totalorder %s89, %s90
    %p102 = scmp.eq.s32.totalorder %s17, 1
    %p103 = por %p101, %p102
    %p105 = scmp.ne.s32.totalorder %s90, %s104
    %p106 = scmp.eq.s32.totalorder %s17, 0
    %p107 = por %p105, %p106
    %s109 = sadd.s32 %s108, 1
    %p112 = scmp.eq.s32.totalorder %s11, 1
    %p113 = scmp.ne.s32.totalorder %s108, %s110
    %p114 = scmp.eq.s32.totalorder %s11, 0
    %p115 = por %p113, %p114
    %p116 = scmp.ne.s32.totalorder %s108, %s110
    %p117 = scmp.eq.s32.totalorder %s16, 1
    %p118 = por %p116, %p117
    %p119 = scmp.ne.s32.totalorder %s110, %s111
    %p120 = scmp.eq.s32.totalorder %s16, 0
    %p121 = por %p119, %p120
    %p122 = scmp.ne.s32.totalorder %s110, %s111
    %p123 = scmp.eq.s32.totalorder %s17, 1
    %p124 = por %p122, %p123
    %p126 = scmp.ne.s32.totalorder %s111, %s125
    %p127 = scmp.eq.s32.totalorder %s17, 0
    %p128 = por %p126, %p127
    %s129 = ssub.s32 %s11, %s18
    %p130 = scmp.eq.s32.totalorder %s129, 0
    %s132 = sadd.s32 %s131, 1
    %s133 = scalar_select %p130, %s131, %s132
    %p136 = pneg %p130
    %p137 = scmp.eq.s32.totalorder %s11, 1
    %p138 = por %p136, %p137
    %p139 = scmp.ne.s32.totalorder %s131, %s134
    %p140 = scmp.eq.s32.totalorder %s11, 0
    %p141 = por %p139, %p140
    %p142 = scmp.ne.s32.totalorder %s131, %s134
    %p143 = scmp.eq.s32.totalorder %s16, 1
    %p144 = por %p142, %p143
    %p145 = scmp.ne.s32.totalorder %s134, %s135
    %p146 = scmp.eq.s32.totalorder %s16, 0
    %p147 = por %p145, %p146
    %p148 = scmp.ne.s32.totalorder %s134, %s135
    %p149 = scmp.eq.s32.totalorder %s17, 1
    %p150 = por %p148, %p149
    %p152 = scmp.ne.s32.totalorder %s135, %s151
    %p153 = scmp.eq.s32.totalorder %s17, 0
    %p154 = por %p152, %p153
    %p155 = scmp.le.s32.totalorder 1, %s11
    %p156 = scmp.lt.s32.totalorder %s11, 3
    %p157 = pnand %p155, %p156
    %p158 = pneg %p157
    // Predicated region
    $region9: #{classification_head.1} parent=5 // pred_check
      _
    $region10: #{classification_head.1} parent=5 // pred_check_branch
      %160 = sbr.rel (%p157) target = $region12
    $region11: #{classification_head.1} parent=5 // pred_region
      %s161 = ssub.s32 %s11, 1
      // Predicated region
      $region13: #{classification_head.1} parent=11 // pred_check
        %p162 = pneg %p58
      $region14: #{classification_head.1} parent=11 // pred_check_branch
        %164 = sbr.rel (%p162) target = $region16
      $region15: #{classification_head.1} parent=11 // pred_region
        _
      $region16: #{classification_head.1} parent=11 // pred_fallthru
        _
      // Predicated region
      $region17: #{classification_head.1} parent=11 // pred_check
        %p165 = pneg %p79
      $region18: #{classification_head.1} parent=11 // pred_check_branch
        %167 = sbr.rel (%p165) target = $region20
      $region19: #{classification_head.1} parent=11 // pred_region
        _
      $region20: #{classification_head.1} parent=11 // pred_fallthru
        _
      // Predicated region
      $region21: #{classification_head.1} parent=11 // pred_check
        %p168 = pneg %p100
      $region22: #{classification_head.1} parent=11 // pred_check_branch
        %170 = sbr.rel (%p168) target = $region24
      $region23: #{classification_head.1} parent=11 // pred_region
        _
      $region24: #{classification_head.1} parent=11 // pred_fallthru
        _
      // Predicated region
      $region25: #{classification_head.1} parent=11 // pred_check
        %p171 = pneg %p121
      $region26: #{classification_head.1} parent=11 // pred_check_branch
        %173 = sbr.rel (%p171) target = $region28
      $region27: #{classification_head.1} parent=11 // pred_region
        _
      $region28: #{classification_head.1} parent=11 // pred_fallthru
        _
    $region12: #{classification_head.1} parent=5 // pred_fallthru
      _
    %p174 = scmp.lt.s32.totalorder %s11, 2
    // Predicated region
    $region29: #{classification_head.1} parent=5 // pred_check
      %p175 = pneg %p174
    $region30: #{classification_head.1} parent=5 // pred_check_branch
      %177 = sbr.rel (%p175) target = $region32
    $region31: #{classification_head.1} parent=5 // pred_region
      // Predicated region
      $region33: #{classification_head.1} parent=31 // pred_check
        %p178 = pneg %p31
      $region34: #{classification_head.1} parent=31 // pred_check_branch
        %180 = sbr.rel (%p178) target = $region36
      $region35: #{classification_head.1} parent=31 // pred_region
        %p181 = scmp.lt.s32.totalorder %s11, 1
        %s182 = scalar_select %p181, %s11, 1
        %s183 = smul.addr %s182, 72
        %s184 = smul.addr %s183, 8
        %s185 = scalar_lea.vmem %s0, %s184
      $region36: #{classification_head.1} parent=31 // pred_fallthru
        _
    $region32: #{classification_head.1} parent=5 // pred_fallthru
      _
    %p186 = scmp.le.s32.totalorder 1, %s11
    %p187 = scmp.lt.s32.totalorder %s11, 3
    %p188 = pnand %p186, %p187
    %p189 = pneg %p188
    // Predicated region
    $region37: #{classification_head.1} parent=5 // pred_check
      _
    $region38: #{classification_head.1} parent=5 // pred_check_branch
      %191 = sbr.rel (%p188) target = $region40
    $region39: #{classification_head.1} parent=5 // pred_region
      %s192 = ssub.s32 %s11, 1
      %p193 = scmp.lt.s32.totalorder %s16, 1
      %s194 = scalar_select %p193, %s16, 1
      %s195 = smul.addr %s194, 72
      %s196 = smul.addr %s195, 8
      %s197 = scalar_lea.vmem %s0, %s196
      %p198 = pneg %p37
      %p199 = pneg %p34
      %p200 = pneg %p58
      %p201 = pneg %p55
      %p202 = pneg %p79
      %p203 = pneg %p76
      %p204 = pneg %p100
      %p205 = pneg %p97
      %p206 = pneg %p121
      %p207 = pneg %p118
      %p208 = pneg %p147
      %p209 = pneg %p144
      %p210 = scmp.lt.s32.totalorder %s16, 1
      %s211 = scalar_select %p210, %s16, 1
      %s212 = smul.addr %s211, 4
      %s213 = smul.addr %s212, 8
      %s214 = scalar_lea.vmem %s5, %s213
      %p215 = scmp.lt.s32.totalorder %s16, 1
      %s216 = scalar_select %p215, %s16, 1
      %s217 = smul.addr %s216, 72
      %s218 = smul.addr %s217, 8
      %s219 = scalar_lea.vmem %s0, %s218
      %p220 = scmp.lt.s32.totalorder %s16, 1
      %s221 = scalar_select %p220, %s16, 1
      %s222 = smul.addr %s221, 4
      %s223 = smul.addr %s222, 8
      %s224 = scalar_lea.vmem %s5, %s223
      %v225 = vld [vmem:[%s219] sm:$0xff]
      %v226 = vld [vmem:[%s219 + $0x8] sm:$0xff]
      %v227 = vld [vmem:[%s219 + $0x10] sm:$0xff]
      %v228 = vld [vmem:[%s219 + $0x18] sm:$0xff]
      %v229 = vld [vmem:[%s219 + $0x20] sm:$0xff]
      %v230 = vld [vmem:[%s219 + $0x28] sm:$0xff]
      %v231 = vld [vmem:[%s219 + $0x30] sm:$0xff]
      %v232 = vld [vmem:[%s219 + $0x38] sm:$0xff]
      %v233 = vld [vmem:[%s219 + $0x40] sm:$0xff]
      %v234 = vld [vmem:[%s219 + $0x48] sm:$0xff]
      %v235 = vld [vmem:[%s219 + $0x50] sm:$0xff]
      %v236 = vld [vmem:[%s219 + $0x58] sm:$0xff]
      %v237 = vld [vmem:[%s219 + $0x60] sm:$0xff]
      %v238 = vld [vmem:[%s219 + $0x68] sm:$0xff]
      %v239 = vld [vmem:[%s219 + $0x70] sm:$0xff]
      %v240 = vld [vmem:[%s219 + $0x78] sm:$0xff]
      %v241 = vld [vmem:[%s219 + $0x80] sm:$0xff]
      %v242 = vld [vmem:[%s219 + $0x88] sm:$0xff]
      %v243 = vld [vmem:[%s219 + $0x90] sm:$0xff]
      %v244 = vld [vmem:[%s219 + $0x98] sm:$0xff]
      %v245 = vld [vmem:[%s219 + $0xa0] sm:$0xff]
      %v246 = vld [vmem:[%s219 + $0xa8] sm:$0xff]
      %v247 = vld [vmem:[%s219 + $0xb0] sm:$0xff]
      %v248 = vld [vmem:[%s219 + $0xb8] sm:$0xff]
      %v249 = vld [vmem:[%s219 + $0xc0] sm:$0xff]
      %v250 = vld [vmem:[%s219 + $0xc8] sm:$0xff]
      %v251 = vld [vmem:[%s219 + $0xd0] sm:$0xff]
      %v252 = vld [vmem:[%s219 + $0xd8] sm:$0xff]
      %v253 = vld [vmem:[%s219 + $0xe0] sm:$0xff]
      %v254 = vld [vmem:[%s219 + $0xe8] sm:$0xff]
      %v255 = vld [vmem:[%s219 + $0xf0] sm:$0xff]
      %v256 = vld [vmem:[%s219 + $0xf8] sm:$0xff]
      %v257 = vld [vmem:[%s219 + $0x100] sm:$0xff]
      %v258 = vld [vmem:[%s219 + $0x108] sm:$0xff]
      %v259 = vld [vmem:[%s219 + $0x110] sm:$0xff]
      %v260 = vld [vmem:[%s219 + $0x118] sm:$0xff]
      %v261 = vld [vmem:[%s219 + $0x120] sm:$0xff]
      %v262 = vld [vmem:[%s219 + $0x128] sm:$0xff]
      %v263 = vld [vmem:[%s219 + $0x130] sm:$0xff]
      %v264 = vld [vmem:[%s219 + $0x138] sm:$0xff]
      %v265 = vld [vmem:[%s219 + $0x140] sm:$0xff]
      %v266 = vld [vmem:[%s219 + $0x148] sm:$0xff]
      %v267 = vld [vmem:[%s219 + $0x150] sm:$0xff]
      %v268 = vld [vmem:[%s219 + $0x158] sm:$0xff]
      %v269 = vld [vmem:[%s219 + $0x160] sm:$0xff]
      %v270 = vld [vmem:[%s219 + $0x168] sm:$0xff]
      %v271 = vld [vmem:[%s219 + $0x170] sm:$0xff]
      %v272 = vld [vmem:[%s219 + $0x178] sm:$0xff]
      %v273 = vld [vmem:[%s219 + $0x180] sm:$0xff]
      %v274 = vld [vmem:[%s219 + $0x188] sm:$0xff]
      %v275 = vld [vmem:[%s219 + $0x190] sm:$0xff]
      %v276 = vld [vmem:[%s219 + $0x198] sm:$0xff]
      %v277 = vld [vmem:[%s219 + $0x1a0] sm:$0xff]
      %v278 = vld [vmem:[%s219 + $0x1a8] sm:$0xff]
      %v279 = vld [vmem:[%s219 + $0x1b0] sm:$0xff]
      %v280 = vld [vmem:[%s219 + $0x1b8] sm:$0xff]
      %v281 = vld [vmem:[%s219 + $0x1c0] sm:$0xff]
      %v282 = vld [vmem:[%s219 + $0x1c8] sm:$0xff]
      %v283 = vld [vmem:[%s219 + $0x1d0] sm:$0xff]
      %v284 = vld [vmem:[%s219 + $0x1d8] sm:$0xff]
      %v285 = vld [vmem:[%s219 + $0x1e0] sm:$0xff]
      %v286 = vld [vmem:[%s219 + $0x1e8] sm:$0xff]
      %v287 = vld [vmem:[%s219 + $0x1f0] sm:$0xff]
      %v288 = vld [vmem:[%s219 + $0x1f8] sm:$0xff]
      %v289 = vld [vmem:[%s219 + $0x200] sm:$0xff]
      %v290 = vld [vmem:[%s219 + $0x208] sm:$0xff]
      %v291 = vld [vmem:[%s219 + $0x210] sm:$0xff]
      %v292 = vld [vmem:[%s219 + $0x218] sm:$0xff]
      %v293 = vld [vmem:[%s219 + $0x220] sm:$0xff]
      %v294 = vld [vmem:[%s219 + $0x228] sm:$0xff]
      %v295 = vld [vmem:[%s219 + $0x230] sm:$0xff]
      %v296 = vld [vmem:[%s219 + $0x238] sm:$0xff]
      %v297 = vld [vmem:[%s1] sm:$0xff]
      %v298 = vld [vmem:[%s1 + $0x8] sm:$0xff]
      %v299 = vld [vmem:[%s1 + $0x10] sm:$0xff]
      %v300 = vld [vmem:[%s1 + $0x18] sm:$0xff]
      %v301 = vld [vmem:[%s1 + $0x20] sm:$0xff]
      %v302 = vld [vmem:[%s1 + $0x28] sm:$0xff]
      %v303 = vld [vmem:[%s1 + $0x30] sm:$0xff]
      %v304 = vld [vmem:[%s1 + $0x38] sm:$0xff]
      %v305 = vld [vmem:[%s1 + $0x40] sm:$0xff]
      %v306 = vld [vmem:[%s1 + $0x48] sm:$0xff]
      %v307 = vld [vmem:[%s1 + $0x50] sm:$0xff]
      %v308 = vld [vmem:[%s1 + $0x58] sm:$0xff]
      %v309 = vld [vmem:[%s2] sm:$0xff]
      %v310 = vld [vmem:[%s2 + $0x8] sm:$0xff]
      %v311 = vld [vmem:[%s2 + $0x10] sm:$0xff]
      %v312 = vld [vmem:[%s2 + $0x18] sm:$0xff]
      %314 = vset.pattern.permute.xlu0 0
      %315 = vperm.xlu0 %314, %v309
      %v316 = vpop.permute.xlu0 %315
      %319 = vset.pattern.permute.xlu0 0
      %320 = vperm.xlu0 %319, %v310
      %v321 = vpop.permute.xlu0 %320
      %324 = vset.pattern.permute.xlu0 0
      %325 = vperm.xlu0 %324, %v311
      %v326 = vpop.permute.xlu0 %325
      %329 = vset.pattern.permute.xlu0 0
      %330 = vperm.xlu0 %329, %v312
      %v331 = vpop.permute.xlu0 %330
      %vm333 = vcmask 261120
      %v335 = vsel %vm333, %v299, 0
      %v338 = vsel %vm333, %v302, 0
      %v341 = vsel %vm333, %v305, 0
      %v344 = vsel %vm333, %v308, 0
      %346 = vmatprep.subr.mxu0 %v226
      %347 = vmatpush1.msra.mxu0 %v225
      %348 = vmatprep.subr.mxu0 %v228
      %349 = vmatpush1.msra.mxu0 %v227
      %350 = vmatprep.subr.mxu0 %v230
      %351 = vmatpush1.msra.mxu0 %v229
      %352 = vmatprep.subr.mxu0 %v232
      %353 = vmatpush1.msra.mxu0 %v231
      %354 = vmatprep.subr.mxu0 %v234
      %355 = vmatpush1.msra.mxu0 %v233
      %356 = vmatprep.subr.mxu0 %v236
      %357 = vmatpush1.msra.mxu0 %v235
      %358 = vmatprep.subr.mxu0 %v238
      %359 = vmatpush1.msra.mxu0 %v237
      %360 = vmatprep.subr.mxu0 %v240
      %361 = vmatpush1.msra.mxu0 %v239
      %362 = vmatprep.subr.mxu0 %v242
      %363 = vmatpush1.msra.mxu0 %v241
      %364 = vmatprep.subr.mxu0 %v244
      %365 = vmatpush1.msra.mxu0 %v243
      %366 = vmatprep.subr.mxu0 %v246
      %367 = vmatpush1.msra.mxu0 %v245
      %368 = vmatprep.subr.mxu0 %v248
      %369 = vmatpush1.msra.mxu0 %v247
      %370 = vmatprep.subr.mxu0 %v250
      %371 = vmatpush1.msra.mxu0 %v249
      %372 = vmatprep.subr.mxu0 %v252
      %373 = vmatpush1.msra.mxu0 %v251
      %374 = vmatprep.subr.mxu0 %v254
      %375 = vmatpush1.msra.mxu0 %v253
      %376 = vmatprep.subr.mxu0 %v256
      %377 = vmatpush1.msra.mxu0 %v255
      %378 = vmatprep.subr.mxu0 %v258
      %379 = vmatpush1.msra.mxu0 %v257
      %380 = vmatprep.subr.mxu0 %v260
      %381 = vmatpush1.msra.mxu0 %v259
      %382 = vmatprep.subr.mxu0 %v262
      %383 = vmatpush1.msra.mxu0 %v261
      %384 = vmatprep.subr.mxu0 %v264
      %385 = vmatpush1.msra.mxu0 %v263
      %386 = vmatprep.subr.mxu0 %v266
      %387 = vmatpush1.msra.mxu0 %v265
      %388 = vmatprep.subr.mxu0 %v268
      %389 = vmatpush1.msra.mxu0 %v267
      %390 = vmatprep.subr.mxu0 %v270
      %391 = vmatpush1.msra.mxu0 %v269
      %392 = vmatprep.subr.mxu0 %v272
      %393 = vmatpush1.msra.mxu0 %v271
      %394 = vmatprep.subr.mxu0 %v274
      %395 = vmatpush1.msra.mxu0 %v273
      %396 = vmatprep.subr.mxu0 %v276
      %397 = vmatpush1.msra.mxu0 %v275
      %398 = vmatprep.subr.mxu0 %v278
      %399 = vmatpush1.msra.mxu0 %v277
      %400 = vmatprep.subr.mxu0 %v280
      %401 = vmatpush1.msra.mxu0 %v279
      %402 = vmatprep.subr.mxu0 %v282
      %403 = vmatpush1.msra.mxu0 %v281
      %404 = vmatprep.subr.mxu0 %v284
      %405 = vmatpush1.msra.mxu0 %v283
      %406 = vmatprep.subr.mxu0 %v286
      %407 = vmatpush1.msra.mxu0 %v285
      %408 = vmatprep.subr.mxu0 %v288
      %409 = vmatpush1.msra.mxu0 %v287
      %410 = vmatprep.mubr.f32.mxu0 %v298
      %411 = vmatmul.mubr.f32.gmra.mrb[0].mxu0 %v297
      %v412 = vpop.f32.mrb[0].mxu0
      %v413 = vadd.f32 %v316, %v412
      %v414 = vpop.f32.mrb[0].mxu0
      %v415 = vadd.f32 %v316, %v414
      %416 = vmatprep.mubr.f32.mxu0 %v301
      %417 = vmatmul.mubr.f32.gmra.mrb[0].mxu0 %v300
      %v418 = vpop.f32.mrb[0].mxu0
      %v419 = vadd.f32 %v321, %v418
      %v420 = vpop.f32.mrb[0].mxu0
      %v421 = vadd.f32 %v321, %v420
      %422 = vmatprep.mubr.f32.mxu0 %v304
      %423 = vmatmul.mubr.f32.gmra.mrb[0].mxu0 %v303
      %v424 = vpop.f32.mrb[0].mxu0
      %v425 = vadd.f32 %v326, %v424
      %v426 = vpop.f32.mrb[0].mxu0
      %v427 = vadd.f32 %v326, %v426
      %428 = vmatprep.mubr.f32.mxu0 %v307
      %429 = vmatmul.mubr.f32.gmra.mrb[0].mxu0 %v306
      %v430 = vpop.f32.mrb[0].mxu0
      %v431 = vadd.f32 %v331, %v430
      %v432 = vpop.f32.mrb[0].mxu0
      %v433 = vadd.f32 %v331, %v432
      %434 = vdwg.mxu0
      %435 = vmatprep.subr.mxu0 %v290
      %436 = vmatpush1.msra.mxu0 %v289
      %437 = vmatprep.subr.mxu0 %v292
      %438 = vmatpush1.msra.mxu0 %v291
      %439 = vmatprep.subr.mxu0 %v294
      %440 = vmatpush1.msra.mxu0 %v293
      %441 = vmatprep.subr.mxu0 %v296
      %442 = vmatpush1.msra.mxu0 %v295
      %443 = vmatprep.subr.mxu0 0.0
      %444 = vmatpush1.msra.mxu0 0.0
      %445 = vmatprep.subr.mxu0 0.0
      %446 = vmatpush1.msra.mxu0 0.0
      %447 = vmatprep.subr.mxu0 0.0
      %448 = vmatpush1.msra.mxu0 0.0
      %449 = vmatprep.subr.mxu0 0.0
      %450 = vmatpush1.msra.mxu0 0.0
      %451 = vmatprep.subr.mxu0 0.0
      %452 = vmatpush1.msra.mxu0 0.0
      %453 = vmatprep.subr.mxu0 0.0
      %454 = vmatpush1.msra.mxu0 0.0
      %455 = vmatprep.subr.mxu0 0.0
      %456 = vmatpush1.msra.mxu0 0.0
      %457 = vmatprep.subr.mxu0 0.0
      %458 = vmatpush1.msra.mxu0 0.0
      %459 = vmatprep.subr.mxu0 0.0
      %460 = vmatpush1.msra.mxu0 0.0
      %461 = vmatprep.subr.mxu0 0.0
      %462 = vmatpush1.msra.mxu0 0.0
      %463 = vmatprep.subr.mxu0 0.0
      %464 = vmatpush1.msra.mxu0 0.0
      %465 = vmatprep.subr.mxu0 0.0
      %466 = vmatpush1.msra.mxu0 0.0
      %467 = vmatprep.subr.mxu0 0.0
      %468 = vmatpush1.msra.mxu0 0.0
      %469 = vmatprep.subr.mxu0 0.0
      %470 = vmatpush1.msra.mxu0 0.0
      %471 = vmatprep.subr.mxu0 0.0
      %472 = vmatpush1.msra.mxu0 0.0
      %473 = vmatprep.subr.mxu0 0.0
      %474 = vmatpush1.msra.mxu0 0.0
      %475 = vmatprep.subr.mxu0 0.0
      %476 = vmatpush1.msra.mxu0 0.0
      %477 = vmatprep.subr.mxu0 0.0
      %478 = vmatpush1.msra.mxu0 0.0
      %479 = vmatprep.subr.mxu0 0.0
      %480 = vmatpush1.msra.mxu0 0.0
      %481 = vmatprep.subr.mxu0 0.0
      %482 = vmatpush1.msra.mxu0 0.0
      %483 = vmatprep.subr.mxu0 0.0
      %484 = vmatpush1.msra.mxu0 0.0
      %485 = vmatprep.subr.mxu0 0.0
      %486 = vmatpush1.msra.mxu0 0.0
      %487 = vmatprep.subr.mxu0 0.0
      %488 = vmatpush1.msra.mxu0 0.0
      %489 = vmatprep.subr.mxu0 0.0
      %490 = vmatpush1.msra.mxu0 0.0
      %491 = vmatprep.subr.mxu0 0.0
      %492 = vmatpush1.msra.mxu0 0.0
      %493 = vmatprep.subr.mxu0 0.0
      %494 = vmatpush1.msra.mxu0 0.0
      %495 = vmatprep.subr.mxu0 0.0
      %496 = vmatpush1.msra.mxu0 0.0
      %497 = vmatprep.subr.mxu0 0.0
      %498 = vmatpush1.msra.mxu0 0.0
      %499 = vmatprep.mubr.f32.mxu0 0.0
      %500 = vmatmul.mubr.f32.gmra.mrb[0].mxu0 %v335
      %v501 = vpop.f32.mrb[0].mxu0
      %v502 = vadd.f32 %v413, %v501
      %v503 = vpop.f32.mrb[0].mxu0
      %v504 = vadd.f32 %v415, %v503
      %505 = vmatprep.mubr.f32.mxu0 0.0
      %506 = vmatmul.mubr.f32.gmra.mrb[0].mxu0 %v338
      %v507 = vpop.f32.mrb[0].mxu0
      %v508 = vadd.f32 %v419, %v507
      %v509 = vpop.f32.mrb[0].mxu0
      %v510 = vadd.f32 %v421, %v509
      %511 = vmatprep.mubr.f32.mxu0 0.0
      %512 = vmatmul.mubr.f32.gmra.mrb[0].mxu0 %v341
      %v513 = vpop.f32.mrb[0].mxu0
      %v514 = vadd.f32 %v425, %v513
      %v515 = vpop.f32.mrb[0].mxu0
      %v516 = vadd.f32 %v427, %v515
      %517 = vmatprep.mubr.f32.mxu0 0.0
      %518 = vmatmul.mubr.f32.gmra.mrb[0].mxu0 %v344
      %v519 = vpop.f32.mrb[0].mxu0
      %v520 = vadd.f32 %v431, %v519
      %v521 = vpop.f32.mrb[0].mxu0
      %v522 = vadd.f32 %v433, %v521
      %523 = vdwg.mxu0
      %v524 = vmax.f32 %v502, 0.0
      %v525 = vmax.f32 %v504, 0.0
      %v526 = vmax.f32 %v508, 0.0
      %v527 = vmax.f32 %v510, 0.0
      %v528 = vmax.f32 %v514, 0.0
      %v529 = vmax.f32 %v516, 0.0
      %v530 = vmax.f32 %v520, 0.0
      %v531 = vmax.f32 %v522, 0.0
      %v532 = vld [vmem:[%s3] sm:$0xff]
      %v533 = vld [vmem:[%s3 + $0x8] sm:$0xf]
      %v534 = vld [vmem:[%s4] sm:$0xff]
      %v535 = vld [vmem:[%s4 + $0x8] sm:$0xf]
      %537 = vset.pattern.permute.xlu0 0
      %538 = vperm.xlu0 %537, %v534
      %v539 = vpop.permute.xlu0 %538
      %542 = vset.pattern.permute.xlu0 0
      %543 = vperm.xlu0 %542, %v535
      %v544 = vpop.permute.xlu0 %543
      %v547 = vsel %vm333, %v532, 0
      %v550 = vsel %vm333, %v533, 0
      %552 = vmatprep.subr.mxu0 %v525
      %553 = vmatpush1.msra.mxu0 %v524
      %554 = vmatprep.subr.mxu0 %v527
      %555 = vmatpush1.msra.mxu0 %v526
      %556 = vmatprep.subr.mxu0 %v529
      %557 = vmatpush1.msra.mxu0 %v528
      %558 = vmatprep.subr.mxu0 %v531
      %559 = vmatpush1.msra.mxu0 %v530
      %560 = vmatprep.subr.mxu0 0.0
      %561 = vmatpush1.msra.mxu0 0.0
      %562 = vmatprep.subr.mxu0 0.0
      %563 = vmatpush1.msra.mxu0 0.0
      %564 = vmatprep.subr.mxu0 0.0
      %565 = vmatpush1.msra.mxu0 0.0
      %566 = vmatprep.subr.mxu0 0.0
      %567 = vmatpush1.msra.mxu0 0.0
      %568 = vmatprep.subr.mxu0 0.0
      %569 = vmatpush1.msra.mxu0 0.0
      %570 = vmatprep.subr.mxu0 0.0
      %571 = vmatpush1.msra.mxu0 0.0
      %572 = vmatprep.subr.mxu0 0.0
      %573 = vmatpush1.msra.mxu0 0.0
      %574 = vmatprep.subr.mxu0 0.0
      %575 = vmatpush1.msra.mxu0 0.0
      %576 = vmatprep.subr.mxu0 0.0
      %577 = vmatpush1.msra.mxu0 0.0
      %578 = vmatprep.subr.mxu0 0.0
      %579 = vmatpush1.msra.mxu0 0.0
      %580 = vmatprep.subr.mxu0 0.0
      %581 = vmatpush1.msra.mxu0 0.0
      %582 = vmatprep.subr.mxu0 0.0
      %583 = vmatpush1.msra.mxu0 0.0
      %584 = vmatprep.subr.mxu0 0.0
      %585 = vmatpush1.msra.mxu0 0.0
      %586 = vmatprep.subr.mxu0 0.0
      %587 = vmatpush1.msra.mxu0 0.0
      %588 = vmatprep.subr.mxu0 0.0
      %589 = vmatpush1.msra.mxu0 0.0
      %590 = vmatprep.subr.mxu0 0.0
      %591 = vmatpush1.msra.mxu0 0.0
      %592 = vmatprep.subr.mxu0 0.0
      %593 = vmatpush1.msra.mxu0 0.0
      %594 = vmatprep.subr.mxu0 0.0
      %595 = vmatpush1.msra.mxu0 0.0
      %596 = vmatprep.subr.mxu0 0.0
      %597 = vmatpush1.msra.mxu0 0.0
      %598 = vmatprep.subr.mxu0 0.0
      %599 = vmatpush1.msra.mxu0 0.0
      %600 = vmatprep.subr.mxu0 0.0
      %601 = vmatpush1.msra.mxu0 0.0
      %602 = vmatprep.subr.mxu0 0.0
      %603 = vmatpush1.msra.mxu0 0.0
      %604 = vmatprep.subr.mxu0 0.0
      %605 = vmatpush1.msra.mxu0 0.0
      %606 = vmatprep.subr.mxu0 0.0
      %607 = vmatpush1.msra.mxu0 0.0
      %608 = vmatprep.subr.mxu0 0.0
      %609 = vmatpush1.msra.mxu0 0.0
      %610 = vmatprep.subr.mxu0 0.0
      %611 = vmatpush1.msra.mxu0 0.0
      %612 = vmatprep.subr.mxu0 0.0
      %613 = vmatpush1.msra.mxu0 0.0
      %614 = vmatprep.subr.mxu0 0.0
      %615 = vmatpush1.msra.mxu0 0.0
      %616 = vmatprep.mubr.f32.mxu0 0.0
      %617 = vmatmul.mubr.f32.gmra.mrb[0].mxu0 %v547
      %v618 = vpop.f32.mrb[0].mxu0
      %v619 = vadd.f32 %v539, %v618
      %v620 = vpop.f32.mrb[0].mxu0
      %v621 = vadd.f32 %v539, %v620
      %622 = vmatprep.mubr.f32.mxu0 0.0
      %623 = vmatmul.mubr.f32.gmra.mrb[0].mxu0 %v550
      %v624 = vpop.f32.mrb[0].mxu0
      %v625 = vadd.f32 %v544, %v624
      %v626 = vpop.f32.mrb[0].mxu0
      %v627 = vadd.f32 %v544, %v626
      %628 = vdwg.mxu0
      %629 = vst [vmem:[%s224] sm:$0xff] %v619
      %630 = vst [vmem:[%s224 + $0x8] sm:$0xff] %v621
      %631 = vst [vmem:[%s224 + $0x10] sm:$0xf] %v625
      %632 = vst [vmem:[%s224 + $0x18] sm:$0xf] %v627
      %p633 = scmp.lt.s32.totalorder %s16, 1
      %s634 = scalar_select %p633, %s16, 1
      %s635 = smul.addr %s634, 4
      %s636 = smul.addr %s635, 8
      %s637 = scalar_lea.vmem %s5, %s636
      // Predicated region
      $region41: #{classification_head.1} parent=39 // pred_check
        %p638 = pneg %p144
      $region42: #{classification_head.1} parent=39 // pred_check_branch
        %640 = sbr.rel (%p638) target = $region44
      $region43: #{classification_head.1} parent=39 // pred_region
        _
      $region44: #{classification_head.1} parent=39 // pred_fallthru
        _
    $region40: #{classification_head.1} parent=5 // pred_fallthru
      _
    %p641 = scmp.le.s32.totalorder 2, %s11
    // Predicated region
    $region45: #{classification_head.1} parent=5 // pred_check
      %p642 = pneg %p641
    $region46: #{classification_head.1} parent=5 // pred_check_branch
      %644 = sbr.rel (%p642) target = $region48
    $region47: #{classification_head.1} parent=5 // pred_region
      %s645 = ssub.s32 %s11, 2
      // Predicated region
      $region49: #{classification_head.1} parent=47 // pred_check
        %p646 = pneg %p150
      $region50: #{classification_head.1} parent=47 // pred_check_branch
        %648 = sbr.rel (%p646) target = $region52
      $region51: #{classification_head.1} parent=47 // pred_region
        %p649 = scmp.lt.s32.totalorder %s17, 1
        %s650 = scalar_select %p649, %s17, 1
        %s651 = smul.addr %s650, 4
        %s652 = smul.addr %s651, 8
        %s653 = scalar_lea.vmem %s5, %s652
      $region52: #{classification_head.1} parent=47 // pred_fallthru
        _
    $region48: #{classification_head.1} parent=5 // pred_fallthru
      _
  $region6: #{classification_head.1} parent=0 // loop_footer
    %s15 = sadd.s32 1, %s11
  $region7: #{classification_head.1} parent=0 // loop_footer_branch
    %10 = sbr.rel target = $region3
  $region8: #{classification_head.1} parent=0 // loop_exit
    _

</llo_original>
